<compile_context>
chip_gen: v7x
topology: tpu7x:2x2x1
jax: 0.10.0
libtpu: 0.0.40
codegen_flags: <defaults>
</compile_context>

<pallas_src>
import functools

import jax
import jax.numpy as jnp
from jax.experimental import pallas as pl
from jax.experimental.pallas import tpu as pltpu


# --------------------------- single-pass kernel ------------------------------

def _channel_gate_kernel(x_ref, w1t_ref, b1_ref, w2t_ref, b2_ref, out_ref, *,
                         hw, chunk):
    bb, c, _ = x_ref.shape

    # ---- pooling: chunked f32 accumulation (one VMEM read pass, no full-slab
    # f32 temporary, no padding mask needed because we never pad H*W) ----
    def reduce_chunk(off, size, s, m):
        xc = x_ref[:, :, pl.ds(off, size)].astype(jnp.float32)   # (bb, c, size)
        return s + jnp.sum(xc, axis=2), jnp.maximum(m, jnp.max(xc, axis=2))

    sum_c = jnp.zeros((bb, c), jnp.float32)
    max_c = jnp.full((bb, c), -jnp.inf, jnp.float32)

    n_full = hw // chunk
    tail = hw - n_full * chunk
    if n_full == 1 and tail == 0:
        sum_c, max_c = reduce_chunk(0, hw, sum_c, max_c)
    else:
        if n_full > 0:
            def body(i, carry):
                s, m = carry
                off = pl.multiple_of(i * chunk, chunk)
                return reduce_chunk(off, chunk, s, m)
            sum_c, max_c = jax.lax.fori_loop(0, n_full, body, (sum_c, max_c))
        if tail > 0:
            sum_c, max_c = reduce_chunk(n_full * chunk, tail, sum_c, max_c)

    avg_c = sum_c * (1.0 / hw)

    # ---- fused shared MLP: both pooled vectors in one matmul pair (tiny) ----
    pooled = jnp.concatenate([avg_c, max_c], axis=0)                 # (2*bb, c)
    h = jnp.dot(pooled, w1t_ref[...], preferred_element_type=jnp.float32)
    h = jnp.maximum(h + b1_ref[...], 0.0)                            # (2*bb, cr)
    y = jnp.dot(h, w2t_ref[...], preferred_element_type=jnp.float32) + b2_ref[...]
    att = y[:bb] + y[bb:]                                            # mlp(avg)+mlp(max)
    scale = jax.nn.sigmoid(att)                                      # f32 (bb, c)

    # ---- gate: multiply in f32, cast ONCE at the store ----
    out_ref[...] = (x_ref[...] * scale[:, :, None]).astype(out_ref.dtype)


# --------------------------- two-pass fallback kernels ------------------------

def _pool_kernel(x_ref, sum_ref, max_ref, *, hw, hw_tile):
    j = pl.program_id(1)

    @pl.when(j == 0)
    def _():
        sum_ref[...] = jnp.zeros_like(sum_ref)
        max_ref[...] = jnp.full_like(max_ref, -jnp.inf)

    xc = x_ref[...].astype(jnp.float32)                      # (bb, c, hw_tile)
    if hw % hw_tile != 0:
        # Only the final partial H*W tile needs masking.
        lane = jax.lax.broadcasted_iota(jnp.int32, xc.shape, 2) + j * hw_tile
        valid = lane < hw
        xs = jnp.where(valid, xc, 0.0)
        xm = jnp.where(valid, xc, -jnp.inf)
    else:
        xs = xc
        xm = xc
    sum_ref[...] += jnp.sum(xs, axis=2, keepdims=True)
    max_ref[...] = jnp.maximum(max_ref[...], jnp.max(xm, axis=2, keepdims=True))


def _scale_kernel(x_ref, scale_ref, out_ref):
    # scale_ref is f32 (bb, C, 1); multiply in f32, cast once at the store.
    out_ref[...] = (x_ref[...] * scale_ref[...]).astype(out_ref.dtype)


# --------------------------------- wrapper -----------------------------------

def _vmem_ceiling_bytes():
    """Safe VMEM request ceiling (stays below v7x's 64 MiB physical VMEM)."""
    try:
        cap = int(pltpu.get_tpu_info().vmem_capacity_bytes)
    except Exception:
        cap = 64 << 20                 # most conservative of v5e/v6e/v7x
    return int(min(48 << 20, max(16 << 20, cap - (16 << 20))))


def channel_gate(x, w1, b1, w2, b2, *, force_two_pass=False):
    """x: (B, C, H, W). Returns x * sigmoid(mlp(avg_pool(x)) + mlp(max_pool(x)))."""
    B, C, H, W = x.shape
    HW = H * W
    Cr = w1.shape[0]
    itemsize = jnp.dtype(x.dtype).itemsize

    x_flat = x.reshape(B, C, HW)       # metadata-only, no HBM traffic

    # Layout plumbing: pre-transpose the MLP weights once in the wrapper.
    w1t = w1.T.astype(jnp.float32)                 # (C, Cr)
    w2t = w2.T.astype(jnp.float32)                 # (Cr, C)
    b1r = b1.reshape(1, Cr).astype(jnp.float32)
    b2r = b2.reshape(1, C).astype(jnp.float32)
    weight_bytes = (w1t.size + w2t.size + b1r.size + b2r.size) * 4

    ceiling = _vmem_ceiling_bytes()
    per_elem_in = C * HW * itemsize                # one batch element of x
    per_elem_f32 = C * HW * 4                      # f32 gate-multiply intermediate

    def step_vmem(bb):
        # double-buffered in & out blocks + f32 intermediate + (buffered) weights
        return bb * (4 * per_elem_in + per_elem_f32) + 4 * weight_bytes

    single_pass_ok = step_vmem(1) <= ceiling - (8 << 20)

    if single_pass_ok and not force_two_pass:
        # ------------------- single pass: grid over batch only ---------------
        target_block = 2 << 20                     # ~2 MiB of x per grid step
        min_steps = min(B, 8)                      # keep pipelining / megacore alive
        bb = max(1, min(B,
                        max(1, target_block // per_elem_in),
                        pl.cdiv(B, min_steps)))
        while bb > 1 and step_vmem(bb) > ceiling - (8 << 20):
            bb -= 1
        grid = (pl.cdiv(B, bb),)
        chunk = min(HW, 2048)                      # pooling lane-chunk

        vmem_limit = int(min(ceiling, max(step_vmem(bb) + (2 << 20), 16 << 20)))
        kernel = functools.partial(_channel_gate_kernel, hw=HW, chunk=chunk)

        out = pl.pallas_call(
            kernel,
            out_shape=jax.ShapeDtypeStruct((B, C, HW), x.dtype),
            grid_spec=pltpu.PrefetchScalarGridSpec(
                num_scalar_prefetch=0,
                grid=grid,
                in_specs=[
                    pl.BlockSpec((bb, C, HW), lambda b: (b, 0, 0)),
                    pl.BlockSpec((C, Cr), lambda b: (0, 0)),
                    pl.BlockSpec((1, Cr), lambda b: (0, 0)),
                    pl.BlockSpec((Cr, C), lambda b: (0, 0)),
                    pl.BlockSpec((1, C), lambda b: (0, 0)),
                ],
                out_specs=pl.BlockSpec((bb, C, HW), lambda b: (b, 0, 0)),
            ),
            compiler_params=pltpu.CompilerParams(
                dimension_semantics=("parallel",),
                vmem_limit_bytes=vmem_limit,
            ),
        )(x_flat, w1t, b1r, w2t, b2r)
        return out.reshape(B, C, H, W)

    # ----------------- two-pass fallback (very large C*HW slabs) -------------
    bb = 1
    target_block = 2 << 20
    cand = (target_block // max(1, bb * C * itemsize)) // 128 * 128
    if cand >= HW or HW <= 128:
        hw_tile = HW                               # full extent (always legal)
    else:
        hw_tile = max(128, cand)                   # multiple of 128
    n_hw = pl.cdiv(HW, hw_tile)
    grid2 = (pl.cdiv(B, bb), n_hw)
    tile_bytes = bb * C * hw_tile

    # Pass 1: pooled sum & max over H*W ('arbitrary' reduction axis).
    pool_vmem = int(min(ceiling,
                        max(tile_bytes * (2 * itemsize + 12) + (4 << 20), 16 << 20)))
    sum_c, max_c = pl.pallas_call(
        functools.partial(_pool_kernel, hw=HW, hw_tile=hw_tile),
        out_shape=(jax.ShapeDtypeStruct((B, C, 1), jnp.float32),
                   jax.ShapeDtypeStruct((B, C, 1), jnp.float32)),
        grid_spec=pltpu.PrefetchScalarGridSpec(
            num_scalar_prefetch=0,
            grid=grid2,
            in_specs=[pl.BlockSpec((bb, C, hw_tile), lambda i, j: (i, 0, j))],
            out_specs=[pl.BlockSpec((bb, C, 1), lambda i, j: (i, 0, 0)),
                       pl.BlockSpec((bb, C, 1), lambda i, j: (i, 0, 0))],
        ),
        compiler_params=pltpu.CompilerParams(
            dimension_semantics=("parallel", "arbitrary"),
            vmem_limit_bytes=pool_vmem,
        ),
    )(x_flat)

    # Tiny shared MLP + sigmoid in plain JAX (negligible: (B, C) sized).
    avg = sum_c[:, :, 0] * (1.0 / HW)
    mx = max_c[:, :, 0]

    def mlp(p):
        return jnp.maximum(p @ w1t + b1r, 0.0) @ w2t + b2r

    scale = jax.nn.sigmoid(mlp(avg) + mlp(mx)).astype(jnp.float32)[:, :, None]

    # Pass 2: stream the gate multiply.
    sc_vmem = int(min(ceiling,
                      max(tile_bytes * (4 * itemsize + 4) + (4 << 20), 16 << 20)))
    out = pl.pallas_call(
        _scale_kernel,
        out_shape=jax.ShapeDtypeStruct((B, C, HW), x.dtype),
        grid_spec=pltpu.PrefetchScalarGridSpec(
            num_scalar_prefetch=0,
            grid=grid2,
            in_specs=[pl.BlockSpec((bb, C, hw_tile), lambda i, j: (i, 0, j)),
                      pl.BlockSpec((bb, C, 1), lambda i, j: (i, 0, 0))],
            out_specs=pl.BlockSpec((bb, C, hw_tile), lambda i, j: (i, 0, j)),
        ),
        compiler_params=pltpu.CompilerParams(
            dimension_semantics=("parallel", "parallel"),
            vmem_limit_bytes=sc_vmem,
        ),
    )(x_flat, scale)
    return out.reshape(B, C, H, W)


def channel_gate_ref(x, w1, b1, w2, b2):
    """Plain-JAX reference mirroring the PyTorch module."""
    B, C, H, W = x.shape
    xf = x.reshape(B, C, H * W).astype(jnp.float32)
    avg_pool = jnp.mean(xf, axis=2)
    max_pool = jnp.max(xf, axis=2)

    def mlp(p):
        h = jnp.maximum(p @ w1.T + b1, 0.0)
        return h @ w2.T + b2

    att = mlp(avg_pool) + mlp(max_pool)
    scale = jax.nn.sigmoid(att)[:, :, None, None]
    return (x.astype(jnp.float32) * scale).astype(x.dtype)


if __name__ == "__main__":
    # ChannelGate(gate_channels=32, reduction_ratio=16) -> hidden = 2
    B, C, H, W = 2, 32, 16, 16
    Cr = max(1, C // 16)

    key = jax.random.PRNGKey(0)
    kx, k1, k2, k3, k4 = jax.random.split(key, 5)

    x = jax.random.normal(kx, (B, C, H, W), dtype=jnp.float32)
    # nn.Linear(C, Cr): weight (Cr, C), bias (Cr,)
    w1 = jax.random.normal(k1, (Cr, C), dtype=jnp.float32) * 0.1
    b1 = jax.random.normal(k2, (Cr,), dtype=jnp.float32) * 0.1
    # nn.Linear(Cr, C): weight (C, Cr), bias (C,)
    w2 = jax.random.normal(k3, (C, Cr), dtype=jnp.float32) * 0.1
    b2 = jax.random.normal(k4, (C,), dtype=jnp.float32) * 0.1

    ref = channel_gate_ref(x, w1, b1, w2, b2)

    # Single-pass path (selected automatically for this shape).
    out = jax.block_until_ready(channel_gate(x, w1, b1, w2, b2))
    assert out.shape == x.shape
    assert jnp.allclose(out, ref, atol=1e-5, rtol=1e-5)

    # Exercise the large-slab two-pass fallback path on the same small input.
    out2 = jax.block_until_ready(channel_gate(x, w1, b1, w2, b2, force_two_pass=True))
    assert jnp.allclose(out2, ref, atol=1e-5, rtol=1e-5)

    print("KERNEL_OK")
</pallas_src>

<mosaic_0001>
module attributes {stable_mosaic.version = 11 : i64} {
  func.func @_channel_gate_kernel(%arg0: i32, %arg1: memref<1x32x256xf32, #tpu.memory_space<vmem>>, %arg2: memref<32x2xf32, #tpu.memory_space<vmem>>, %arg3: memref<1x2xf32, #tpu.memory_space<vmem>>, %arg4: memref<2x32xf32, #tpu.memory_space<vmem>>, %arg5: memref<1x32xf32, #tpu.memory_space<vmem>>, %arg6: memref<1x32x256xf32, #tpu.memory_space<vmem>>) attributes {dimension_semantics = [#tpu.dimension_semantics<parallel>], iteration_bounds = array<i64: 2>, scalar_prefetch = 0 : i64, scratch_operands = 0 : i64, tpu.core_type = #tpu.core_type<tc>, window_params = [{transform_indices = @transform_0, window_bounds = array<i64: 1, 32, 256>}, {pipeline_mode = #tpu.pipeline_mode<synchronous>, transform_indices = @transform_1, window_bounds = array<i64: 32, 2>}, {pipeline_mode = #tpu.pipeline_mode<synchronous>, transform_indices = @transform_2, window_bounds = array<i64: 1, 2>}, {pipeline_mode = #tpu.pipeline_mode<synchronous>, transform_indices = @transform_3, window_bounds = array<i64: 2, 32>}, {pipeline_mode = #tpu.pipeline_mode<synchronous>, transform_indices = @transform_4, window_bounds = array<i64: 1, 32>}, {transform_indices = @transform_5, window_bounds = array<i64: 1, 32, 256>}]} {
    %cst = arith.constant 0.000000e+00 : f32
    %0 = vector.broadcast %cst : f32 to vector<1x32xf32>
    %cst_0 = arith.constant 0xFF800000 : f32
    %1 = vector.broadcast %cst_0 : f32 to vector<1x32xf32>
    %c0 = arith.constant 0 : index
    %c0_1 = arith.constant 0 : index
    %c0_2 = arith.constant 0 : index
    %2 = vector.load %arg1[%c0, %c0_1, %c0_2] : memref<1x32x256xf32, #tpu.memory_space<vmem>>, vector<1x32x256xf32>
    %cst_3 = arith.constant dense<0.000000e+00> : vector<1x32xf32>
    %3 = vector.multi_reduction <add>, %2, %cst_3 [2] : vector<1x32x256xf32> to vector<1x32xf32>
    %4 = arith.addf %0, %3 : vector<1x32xf32>
    %cst_4 = arith.constant dense<0xFF800000> : vector<1x32xf32>
    %5 = vector.multi_reduction <maximumf>, %2, %cst_4 [2] : vector<1x32x256xf32> to vector<1x32xf32>
    %6 = arith.maximumf %1, %5 : vector<1x32xf32>
    %cst_5 = arith.constant 3.906250e-03 : f32
    %7 = vector.broadcast %cst_5 : f32 to vector<1x32xf32>
    %8 = arith.mulf %4, %7 : vector<1x32xf32>
    %9 = tpu.concatenate %8, %6 in 0 : vector<1x32xf32>, vector<1x32xf32> -> vector<2x32xf32>
    %c0_6 = arith.constant 0 : index
    %c0_7 = arith.constant 0 : index
    %10 = vector.load %arg2[%c0_6, %c0_7] : memref<32x2xf32, #tpu.memory_space<vmem>>, vector<32x2xf32>
    %cst_8 = arith.constant dense<0.000000e+00> : vector<2x2xf32>
    %11 = tpu.matmul %9, %10, %cst_8 {dimension_numbers = #tpu.dot_dimension_numbers<[1], [0], [0], [1], [0, 0, 1, 1], [], []>} : vector<2x32xf32>, vector<32x2xf32>, vector<2x2xf32> -> vector<2x2xf32>
    %c0_9 = arith.constant 0 : index
    %c0_10 = arith.constant 0 : index
    %12 = vector.load %arg3[%c0_9, %c0_10] : memref<1x2xf32, #tpu.memory_space<vmem>>, vector<1x2xf32>
    %13 = vector.broadcast %12 : vector<1x2xf32> to vector<2x2xf32>
    %14 = arith.addf %11, %13 : vector<2x2xf32>
    %cst_11 = arith.constant 0.000000e+00 : f32
    %15 = vector.broadcast %cst_11 : f32 to vector<2x2xf32>
    %16 = arith.maximumf %14, %15 : vector<2x2xf32>
    %c0_12 = arith.constant 0 : index
    %c0_13 = arith.constant 0 : index
    %17 = vector.load %arg4[%c0_12, %c0_13] : memref<2x32xf32, #tpu.memory_space<vmem>>, vector<2x32xf32>
    %cst_14 = arith.constant dense<0.000000e+00> : vector<2x32xf32>
    %18 = tpu.matmul %16, %17, %cst_14 {dimension_numbers = #tpu.dot_dimension_numbers<[1], [0], [0], [1], [0, 0, 1, 1], [], []>} : vector<2x2xf32>, vector<2x32xf32>, vector<2x32xf32> -> vector<2x32xf32>
    %c0_15 = arith.constant 0 : index
    %c0_16 = arith.constant 0 : index
    %19 = vector.load %arg5[%c0_15, %c0_16] : memref<1x32xf32, #tpu.memory_space<vmem>>, vector<1x32xf32>
    %20 = vector.broadcast %19 : vector<1x32xf32> to vector<2x32xf32>
    %21 = arith.addf %18, %20 : vector<2x32xf32>
    %22 = vector.extract_strided_slice %21 {offsets = [0, 0], sizes = [1, 32], strides = [1, 1]} : vector<2x32xf32> to vector<1x32xf32>
    %23 = vector.extract_strided_slice %21 {offsets = [1, 0], sizes = [1, 32], strides = [1, 1]} : vector<2x32xf32> to vector<1x32xf32>
    %24 = arith.addf %22, %23 : vector<1x32xf32>
    %25 = arith.negf %24 : vector<1x32xf32>
    %26 = math.exp %25 : vector<1x32xf32>
    %cst_17 = arith.constant 1.000000e+00 : f32
    %27 = vector.broadcast %cst_17 : f32 to vector<1x32xf32>
    %28 = arith.addf %27, %26 : vector<1x32xf32>
    %29 = arith.divf %27, %28 : vector<1x32xf32>
    %c0_18 = arith.constant 0 : index
    %c0_19 = arith.constant 0 : index
    %c0_20 = arith.constant 0 : index
    %30 = vector.load %arg1[%c0_18, %c0_19, %c0_20] : memref<1x32x256xf32, #tpu.memory_space<vmem>>, vector<1x32x256xf32>
    %31 = vector.shape_cast %29 : vector<1x32xf32> to vector<1x32x1xf32>
    %32 = vector.broadcast %31 : vector<1x32x1xf32> to vector<1x32x256xf32>
    %33 = arith.mulf %30, %32 : vector<1x32x256xf32>
    %c0_21 = arith.constant 0 : index
    %c0_22 = arith.constant 0 : index
    %c0_23 = arith.constant 0 : index
    %34 = vector.load %arg6[%c0_21, %c0_22, %c0_23] : memref<1x32x256xf32, #tpu.memory_space<vmem>>, vector<1x32x256xf32>
    tpu.vector_store %arg6[%c0_21, %c0_22, %c0_23], %33 {strides = array<i32>} : memref<1x32x256xf32, #tpu.memory_space<vmem>>, vector<1x32x256xf32>,
    return
  }
  func.func @transform_0(%arg0: i32) -> (i32, i32, i32) {
    %c0_i32 = arith.constant 0 : i32
    %c0_i32_0 = arith.constant 0 : i32
    %c0_i32_1 = arith.constant 0 : i32
    return %arg0, %c0_i32, %c0_i32_0 : i32, i32, i32
  }
  func.func @transform_1(%arg0: i32) -> (i32, i32) {
    %c0_i32 = arith.constant 0 : i32
    %c0_i32_0 = arith.constant 0 : i32
    %c0_i32_1 = arith.constant 0 : i32
    return %c0_i32, %c0_i32_0 : i32, i32
  }
  func.func @transform_2(%arg0: i32) -> (i32, i32) {
    %c0_i32 = arith.constant 0 : i32
    %c0_i32_0 = arith.constant 0 : i32
    %c0_i32_1 = arith.constant 0 : i32
    return %c0_i32, %c0_i32_0 : i32, i32
  }
  func.func @transform_3(%arg0: i32) -> (i32, i32) {
    %c0_i32 = arith.constant 0 : i32
    %c0_i32_0 = arith.constant 0 : i32
    %c0_i32_1 = arith.constant 0 : i32
    return %c0_i32, %c0_i32_0 : i32, i32
  }
  func.func @transform_4(%arg0: i32) -> (i32, i32) {
    %c0_i32 = arith.constant 0 : i32
    %c0_i32_0 = arith.constant 0 : i32
    %c0_i32_1 = arith.constant 0 : i32
    return %c0_i32, %c0_i32_0 : i32, i32
  }
  func.func @transform_5(%arg0: i32) -> (i32, i32, i32) {
    %c0_i32 = arith.constant 0 : i32
    %c0_i32_0 = arith.constant 0 : i32
    %c0_i32_1 = arith.constant 0 : i32
    return %arg0, %c0_i32, %c0_i32_0 : i32, i32, i32
  }
}

</mosaic_0001>

<llo_original>
// kernel: tpu_custom_call.1
$region0: #{tpu_custom_call.1}
  #allocation0 [shape = 'u32[]', space=smem, size = 0x4, offset = 0x4, fixed_abs, tag = 'smem constant byte address 0x4 - core index']
  #allocation1 [shape = 'u32[144,128]{1,0:T(1,128)}', space=vmem, size = 0x12000, scoped, tag = 'internal scratch']
  %s0 = inlined_call_operand.hbm [shape: f32[2,32,256], index: 0, kind: input, shape index: {}]
  %s1 = inlined_call_operand.vmem [shape: f32[32,2], index: 1, kind: input, shape index: {}]
  %s2 = inlined_call_operand.vmem [shape: f32[1,2], index: 2, kind: input, shape index: {}]
  %s3 = inlined_call_operand.vmem [shape: f32[2,32], index: 3, kind: input, shape index: {}]
  %s4 = inlined_call_operand.vmem [shape: f32[1,32], index: 4, kind: input, shape index: {}]
  %s5 = inlined_call_operand.hbm [shape: f32[2,32,256], index: 5, kind: output, shape index: {}]
  %s6 = sld [smem:[#allocation0]]
  $region57: #{tpu_custom_call.1} parent=0
    _
  %s8 = ssub.s32 1, %s6
  %s9 = scalar_select 0, %s8, %s6
  $region1: #{tpu_custom_call.1} parent=0
    #allocation2 [shape = 'u8[65536]{0}', space=vmem, size = 0x10000, scoped, tag = 'input window, operand 0']
    #allocation3 [shape = 's32[2]{0}', space=sflag, size = 0x8, scoped, tag = 'scoped memory for tpu_custom_call.1']
    #allocation4 [shape = 's32[2]{0}', space=sflag, size = 0x8, scoped, tag = 'scoped memory for tpu_custom_call.1']
    #allocation5 [shape = 'u8[65536]{0}', space=vmem, size = 0x10000, scoped, tag = 'output window, operand 0']
    %10 = vsyncpa [#allocation3], 0
    %s11 = scalar_lea.sflag [#allocation3], 1
    %12 = vsyncpa %s11, 0
    %13 = vsyncpa [#allocation4], 0
    %s14 = scalar_lea.sflag [#allocation4], 1
    %15 = vsyncpa %s14, 0
    loop: start=0, step=1, limit=4
    $region2: #{tpu_custom_call.1} parent=1 // loop_pre_header
      _
    $region3: #{tpu_custom_call.1} parent=1 // loop_header
      %s17 = sphi 0, %s21
      %p18 = scmp.ge.s32.totalorder %s17, 4
      %s27 = sphi 0, %s29
      %s30 = sphi 0, %s27
      %s31 = sphi 0, %s30
      %s47 = sphi 0, %s31
      %s51 = sphi 0, %s51
      %s53 = sphi 0, %s51
      %s54 = sphi 0, %s53
      %s68 = sphi 0, %s54
      %s72 = sphi 0, %s72
      %s74 = sphi 0, %s72
      %s75 = sphi 0, %s74
      %s89 = sphi 0, %s75
      %s93 = sphi 0, %s93
      %s95 = sphi 0, %s93
      %s96 = sphi 0, %s95
      %s110 = sphi 0, %s96
      %s114 = sphi 0, %s114
      %s116 = sphi 0, %s114
      %s117 = sphi 0, %s116
      %s131 = sphi 0, %s117
      %s137 = sphi 0, %s139
      %s140 = sphi 0, %s137
      %s141 = sphi 0, %s140
      %s157 = sphi 0, %s141
    $region4: #{tpu_custom_call.1} parent=1 // loop_header_branch
      %20 = sbr.rel (%p18) target = $region8
    $region5: #{tpu_custom_call.1} parent=1 // loop_body
      %s22 = ssub.s32 %s17, 1
      %s23 = ssub.s32 %s17, 2
      %s24 = sadd.s32 %s17, 1
      %s25 = ssub.s32 %s17, %s24
      %p26 = scmp.eq.s32.totalorder %s25, 0
      %s28 = sadd.s32 %s27, 1
      %s29 = scalar_select %p26, %s27, %s28
      %p32 = pneg %p26
      %p33 = scmp.eq.s32.totalorder %s17, 1
      %p34 = por %p32, %p33
      %p35 = scmp.ne.s32.totalorder %s27, %s30
      %p36 = scmp.eq.s32.totalorder %s17, 0
      %p37 = por %p35, %p36
      %p38 = scmp.ne.s32.totalorder %s27, %s30
      %p39 = scmp.eq.s32.totalorder %s22, 1
      %p40 = por %p38, %p39
      %p41 = scmp.ne.s32.totalorder %s30, %s31
      %p42 = scmp.eq.s32.totalorder %s22, 0
      %p43 = por %p41, %p42
      %p44 = scmp.ne.s32.totalorder %s30, %s31
      %p45 = scmp.eq.s32.totalorder %s23, 1
      %p46 = por %p44, %p45
      %p48 = scmp.ne.s32.totalorder %s31, %s47
      %p49 = scmp.eq.s32.totalorder %s23, 0
      %p50 = por %p48, %p49
      %s52 = sadd.s32 %s51, 1
      %p55 = scmp.eq.s32.totalorder %s17, 1
      %p56 = scmp.ne.s32.totalorder %s51, %s53
      %p57 = scmp.eq.s32.totalorder %s17, 0
      %p58 = por %p56, %p57
      %p59 = scmp.ne.s32.totalorder %s51, %s53
      %p60 = scmp.eq.s32.totalorder %s22, 1
      %p61 = por %p59, %p60
      %p62 = scmp.ne.s32.totalorder %s53, %s54
      %p63 = scmp.eq.s32.totalorder %s22, 0
      %p64 = por %p62, %p63
      %p65 = scmp.ne.s32.totalorder %s53, %s54
      %p66 = scmp.eq.s32.totalorder %s23, 1
      %p67 = por %p65, %p66
      %p69 = scmp.ne.s32.totalorder %s54, %s68
      %p70 = scmp.eq.s32.totalorder %s23, 0
      %p71 = por %p69, %p70
      %s73 = sadd.s32 %s72, 1
      %p76 = scmp.eq.s32.totalorder %s17, 1
      %p77 = scmp.ne.s32.totalorder %s72, %s74
      %p78 = scmp.eq.s32.totalorder %s17, 0
      %p79 = por %p77, %p78
      %p80 = scmp.ne.s32.totalorder %s72, %s74
      %p81 = scmp.eq.s32.totalorder %s22, 1
      %p82 = por %p80, %p81
      %p83 = scmp.ne.s32.totalorder %s74, %s75
      %p84 = scmp.eq.s32.totalorder %s22, 0
      %p85 = por %p83, %p84
      %p86 = scmp.ne.s32.totalorder %s74, %s75
      %p87 = scmp.eq.s32.totalorder %s23, 1
      %p88 = por %p86, %p87
      %p90 = scmp.ne.s32.totalorder %s75, %s89
      %p91 = scmp.eq.s32.totalorder %s23, 0
      %p92 = por %p90, %p91
      %s94 = sadd.s32 %s93, 1
      %p97 = scmp.eq.s32.totalorder %s17, 1
      %p98 = scmp.ne.s32.totalorder %s93, %s95
      %p99 = scmp.eq.s32.totalorder %s17, 0
      %p100 = por %p98, %p99
      %p101 = scmp.ne.s32.totalorder %s93, %s95
      %p102 = scmp.eq.s32.totalorder %s22, 1
      %p103 = por %p101, %p102
      %p104 = scmp.ne.s32.totalorder %s95, %s96
      %p105 = scmp.eq.s32.totalorder %s22, 0
      %p106 = por %p104, %p105
      %p107 = scmp.ne.s32.totalorder %s95, %s96
      %p108 = scmp.eq.s32.totalorder %s23, 1
      %p109 = por %p107, %p108
      %p111 = scmp.ne.s32.totalorder %s96, %s110
      %p112 = scmp.eq.s32.totalorder %s23, 0
      %p113 = por %p111, %p112
      %s115 = sadd.s32 %s114, 1
      %p118 = scmp.eq.s32.totalorder %s17, 1
      %p119 = scmp.ne.s32.totalorder %s114, %s116
      %p120 = scmp.eq.s32.totalorder %s17, 0
      %p121 = por %p119, %p120
      %p122 = scmp.ne.s32.totalorder %s114, %s116
      %p123 = scmp.eq.s32.totalorder %s22, 1
      %p124 = por %p122, %p123
      %p125 = scmp.ne.s32.totalorder %s116, %s117
      %p126 = scmp.eq.s32.totalorder %s22, 0
      %p127 = por %p125, %p126
      %p128 = scmp.ne.s32.totalorder %s116, %s117
      %p129 = scmp.eq.s32.totalorder %s23, 1
      %p130 = por %p128, %p129
      %p132 = scmp.ne.s32.totalorder %s117, %s131
      %p133 = scmp.eq.s32.totalorder %s23, 0
      %p134 = por %p132, %p133
      %s135 = ssub.s32 %s17, %s24
      %p136 = scmp.eq.s32.totalorder %s135, 0
      %s138 = sadd.s32 %s137, 1
      %s139 = scalar_select %p136, %s137, %s138
      %p142 = pneg %p136
      %p143 = scmp.eq.s32.totalorder %s17, 1
      %p144 = por %p142, %p143
      %p145 = scmp.ne.s32.totalorder %s137, %s140
      %p146 = scmp.eq.s32.totalorder %s17, 0
      %p147 = por %p145, %p146
      %p148 = scmp.ne.s32.totalorder %s137, %s140
      %p149 = scmp.eq.s32.totalorder %s22, 1
      %p150 = por %p148, %p149
      %p151 = scmp.ne.s32.totalorder %s140, %s141
      %p152 = scmp.eq.s32.totalorder %s22, 0
      %p153 = por %p151, %p152
      %p154 = scmp.ne.s32.totalorder %s140, %s141
      %p155 = scmp.eq.s32.totalorder %s23, 1
      %p156 = por %p154, %p155
      %p158 = scmp.ne.s32.totalorder %s141, %s157
      %p159 = scmp.eq.s32.totalorder %s23, 0
      %p160 = por %p158, %p159
      %p161 = scmp.le.s32.totalorder 1, %s17
      %p162 = scmp.lt.s32.totalorder %s17, 3
      %p163 = pnand %p161, %p162
      %p164 = pneg %p163
      // Predicated region
      $region9: #{tpu_custom_call.1} parent=5 // pred_check
        _
      $region10: #{tpu_custom_call.1} parent=5 // pred_check_branch
        %166 = sbr.rel (%p163) target = $region12
      $region11: #{tpu_custom_call.1} parent=5 // pred_region
        %s167 = ssub.s32 %s17, 1
        // Predicated region
        $region13: #{tpu_custom_call.1} parent=11 // pred_check
          %p168 = pneg %p64
        $region14: #{tpu_custom_call.1} parent=11 // pred_check_branch
          %170 = sbr.rel (%p168) target = $region16
        $region15: #{tpu_custom_call.1} parent=11 // pred_region
          _
        $region16: #{tpu_custom_call.1} parent=11 // pred_fallthru
          _
        // Predicated region
        $region17: #{tpu_custom_call.1} parent=11 // pred_check
          %p171 = pneg %p85
        $region18: #{tpu_custom_call.1} parent=11 // pred_check_branch
          %173 = sbr.rel (%p171) target = $region20
        $region19: #{tpu_custom_call.1} parent=11 // pred_region
          _
        $region20: #{tpu_custom_call.1} parent=11 // pred_fallthru
          _
        // Predicated region
        $region21: #{tpu_custom_call.1} parent=11 // pred_check
          %p174 = pneg %p106
        $region22: #{tpu_custom_call.1} parent=11 // pred_check_branch
          %176 = sbr.rel (%p174) target = $region24
        $region23: #{tpu_custom_call.1} parent=11 // pred_region
          _
        $region24: #{tpu_custom_call.1} parent=11 // pred_fallthru
          _
        // Predicated region
        $region25: #{tpu_custom_call.1} parent=11 // pred_check
          %p177 = pneg %p127
        $region26: #{tpu_custom_call.1} parent=11 // pred_check_branch
          %179 = sbr.rel (%p177) target = $region28
        $region27: #{tpu_custom_call.1} parent=11 // pred_region
          _
        $region28: #{tpu_custom_call.1} parent=11 // pred_fallthru
          _
      $region12: #{tpu_custom_call.1} parent=5 // pred_fallthru
        _
      %p180 = scmp.lt.s32.totalorder %s17, 2
      // Predicated region
      $region29: #{tpu_custom_call.1} parent=5 // pred_check
        %p181 = pneg %p180
      $region30: #{tpu_custom_call.1} parent=5 // pred_check_branch
        %183 = sbr.rel (%p181) target = $region32
      $region31: #{tpu_custom_call.1} parent=5 // pred_region
        // Predicated region
        $region33: #{tpu_custom_call.1} parent=31 // pred_check
          %p184 = pneg %p37
        $region34: #{tpu_custom_call.1} parent=31 // pred_check_branch
          %186 = sbr.rel (%p184) target = $region36
        $region35: #{tpu_custom_call.1} parent=31 // pred_region
          %s187 = sand.u32 %s27, 1
          %s188 = scalar_lea.sflag [#allocation3], %s187
          %s189 = sand.u32 %s27, 1
          %s190 = smul.addr %s189, 64
          %s191 = scalar_lea.vmem [#allocation2], %s190
          %s193 = ssub.s32 1024, 1024
          %194 = vsyncadd %s188, %s193
          %s195 = smul.addr %s17, 8
          %s196 = smul.addr %s195, 128
          %s197 = scalar_lea.hbm %s0, %s196
          %s198 = sshll.u32 %s191, 4
          %s199 = int_to_ptr.vmem [resolvable:$true] %s198
          %204 = dma.hbm_to_vmem [thread:$0]  %s197, 1024, %s199, %s188, 256, 256, 16
        $region36: #{tpu_custom_call.1} parent=31 // pred_fallthru
          _
      $region32: #{tpu_custom_call.1} parent=5 // pred_fallthru
        _
      %p205 = scmp.le.s32.totalorder 1, %s17
      %p206 = scmp.lt.s32.totalorder %s17, 3
      %p207 = pnand %p205, %p206
      %p208 = pneg %p207
      // Predicated region
      $region37: #{tpu_custom_call.1} parent=5 // pred_check
        _
      $region38: #{tpu_custom_call.1} parent=5 // pred_check_branch
        %210 = sbr.rel (%p207) target = $region40
      $region39: #{tpu_custom_call.1} parent=5 // pred_region
        %s211 = ssub.s32 %s17, 1
        %s212 = sand.u32 %s30, 1
        %s213 = scalar_lea.sflag [#allocation3], %s212
        %s214 = sand.u32 %s30, 1
        %s215 = smul.addr %s214, 64
        %s216 = scalar_lea.vmem [#allocation2], %s215
        // Predicated region
        $region41: #{tpu_custom_call.1} parent=39 // pred_check
          %p217 = pneg %p43
        $region42: #{tpu_custom_call.1} parent=39 // pred_check_branch
          %219 = sbr.rel (%p217) target = $region44
        $region43: #{tpu_custom_call.1} parent=39 // pred_region
          %220 = dma.done %s213, 1024
        $region44: #{tpu_custom_call.1} parent=39 // pred_fallthru
          _
        %s221 = sand.u32 %s30, 1
        %s222 = scalar_lea.sflag [#allocation3], %s221
        %s223 = sand.u32 %s30, 1
        %s224 = smul.addr %s223, 64
        %s225 = scalar_lea.vmem [#allocation2], %s224
        %p226 = pneg %p43
        %p227 = pneg %p40
        %p228 = pneg %p64
        %p229 = pneg %p61
        %p230 = pneg %p85
        %p231 = pneg %p82
        %p232 = pneg %p106
        %p233 = pneg %p103
        %p234 = pneg %p127
        %p235 = pneg %p124
        %p236 = pneg %p153
        %p237 = pneg %p150
        %s238 = sand.u32 %s140, 1
        %s239 = scalar_lea.sflag [#allocation4], %s238
        %s240 = sand.u32 %s140, 1
        %s241 = smul.addr %s240, 64
        %s242 = scalar_lea.vmem [#allocation5], %s241
        %v243 = vld [vmem:[%s216] sm:$0xff]
        %v244 = vld [vmem:[%s216 + $0x8] sm:$0xff]
        %v245 = vld [vmem:[%s216 + $0x10] sm:$0xff]
        %v246 = vld [vmem:[%s216 + $0x18] sm:$0xff]
        %v247 = vld [vmem:[%s216 + $0x20] sm:$0xff]
        %v248 = vld [vmem:[%s216 + $0x28] sm:$0xff]
        %v249 = vld [vmem:[%s216 + $0x30] sm:$0xff]
        %v250 = vld [vmem:[%s216 + $0x38] sm:$0xff]
        %v251 = vadd.f32 %v243, %v244
        %252 = vadd.xlane.f32.xlu0 %v251
        %v253 = vpop.xlane.xlu0 %252
        %v254 = vadd.f32 %v245, %v246
        %255 = vadd.xlane.f32.xlu0 %v254
        %v256 = vpop.xlane.xlu0 %255
        %v257 = vadd.f32 %v247, %v248
        %258 = vadd.xlane.f32.xlu0 %v257
        %v259 = vpop.xlane.xlu0 %258
        %v260 = vadd.f32 %v249, %v250
        %261 = vadd.xlane.f32.xlu0 %v260
        %v262 = vpop.xlane.xlu0 %261
        %v263 = vadd.f32 %v253, 0.0
        %v264 = vadd.f32 %v256, 0.0
        %v265 = vadd.f32 %v259, 0.0
        %v266 = vadd.f32 %v262, 0.0
        %v267 = vmax.f32 %v243, %v244
        %268 = vmax.xlane.f32.xlu0 %v267
        %v269 = vpop.xlane.xlu0 %268
        %v270 = vmax.f32 %v245, %v246
        %271 = vmax.xlane.f32.xlu0 %v270
        %v272 = vpop.xlane.xlu0 %271
        %v273 = vmax.f32 %v247, %v248
        %274 = vmax.xlane.f32.xlu0 %v273
        %v275 = vpop.xlane.xlu0 %274
        %v276 = vmax.f32 %v249, %v250
        %277 = vmax.xlane.f32.xlu0 %v276
        %v278 = vpop.xlane.xlu0 %277
        %v279 = vmul.f32 %v263, 0.00390625
        %v280 = vmul.f32 %v264, 0.00390625
        %v281 = vmul.f32 %v265, 0.00390625
        %v282 = vmul.f32 %v266, 0.00390625
        %v287 = vlaneseq
        %v288 = vand.u32 %v287, 127
        %v289 = vlaneseq
        %v290 = vshrl.u32 %v289, 7
        %v291 = vsub.s32 %v288, %v290
        %v292 = vrot.slane %v279, %v291
        %v293 = vadd.s32 %v288, 4294967288
        %v294 = vlaneseq
        %v295 = vshrl.u32 %v294, 7
        %v296 = vsub.s32 %v293, %v295
        %v297 = vrot.slane %v280, %v296
        %vm298 = vcmask 130112
        %v299 = vsel %vm298, %v297, %v292
        %v300 = vadd.s32 %v288, 4294967280
        %v301 = vlaneseq
        %v302 = vshrl.u32 %v301, 7
        %v303 = vsub.s32 %v300, %v302
        %v304 = vrot.slane %v281, %v303
        %vm305 = vcmask 195712
        %v306 = vsel %vm305, %v304, %v299
        %v307 = vadd.s32 %v288, 4294967272
        %v308 = vlaneseq
        %v309 = vshrl.u32 %v308, 7
        %v310 = vsub.s32 %v307, %v309
        %v311 = vrot.slane %v282, %v310
        %vm312 = vcmask 261312
        %v313 = vsel %vm312, %v311, %v306
        %v319 = vlaneseq
        %v320 = vshrl.u32 %v319, 7
        %v321 = vsub.s32 %v288, %v320
        %v322 = vrot.slane %v269, %v321
        %v323 = vlaneseq
        %v324 = vshrl.u32 %v323, 7
        %v325 = vsub.s32 %v293, %v324
        %v326 = vrot.slane %v272, %v325
        %v327 = vsel %vm298, %v326, %v322
        %v328 = vlaneseq
        %v329 = vshrl.u32 %v328, 7
        %v330 = vsub.s32 %v300, %v329
        %v331 = vrot.slane %v275, %v330
        %v332 = vsel %vm305, %v331, %v327
        %v333 = vlaneseq
        %v334 = vshrl.u32 %v333, 7
        %v335 = vsub.s32 %v307, %v334
        %v336 = vrot.slane %v278, %v335
        %v337 = vsel %vm312, %v336, %v332
        %vm339 = vcmask 1040384
        %v340 = vsel %vm339, %v313, %v337
        %v341 = vld [vmem:[%s1] sm:$0xff]
        %v342 = vld [vmem:[%s1 + $0x8] sm:$0xff]
        %v343 = vld [vmem:[%s1 + $0x10] sm:$0xff]
        %v344 = vld [vmem:[%s1 + $0x18] sm:$0xff]
        %v345 = vld [vmem:[%s2] sm:$0x1]
        %v347 = vlaneseq
        %v348 = vshrl.u32 %v347, 7
        %v349 = vsub.s32 0, %v348
        %v350 = vrot.slane %v345, %v349
        %vm352 = vcmask 261120
        %v354 = vsel %vm352, %v340, 0
        %356 = vmatprep.subr.mxu0 0.0
        %357 = vmatpush1.msra.mxu0 %v341
        %358 = vmatprep.subr.mxu0 0.0
        %359 = vmatpush1.msra.mxu0 %v342
        %360 = vmatprep.subr.mxu0 0.0
        %361 = vmatpush1.msra.mxu0 %v343
        %362 = vmatprep.subr.mxu0 0.0
        %363 = vmatpush1.msra.mxu0 %v344
        %364 = vmatprep.subr.mxu0 0.0
        %365 = vmatpush1.msra.mxu0 0.0
        %366 = vmatprep.subr.mxu0 0.0
        %367 = vmatpush1.msra.mxu0 0.0
        %368 = vmatprep.subr.mxu0 0.0
        %369 = vmatpush1.msra.mxu0 0.0
        %370 = vmatprep.subr.mxu0 0.0
        %371 = vmatpush1.msra.mxu0 0.0
        %372 = vmatprep.subr.mxu0 0.0
        %373 = vmatpush1.msra.mxu0 0.0
        %374 = vmatprep.subr.mxu0 0.0
        %375 = vmatpush1.msra.mxu0 0.0
        %376 = vmatprep.subr.mxu0 0.0
        %377 = vmatpush1.msra.mxu0 0.0
        %378 = vmatprep.subr.mxu0 0.0
        %379 = vmatpush1.msra.mxu0 0.0
        %380 = vmatprep.subr.mxu0 0.0
        %381 = vmatpush1.msra.mxu0 0.0
        %382 = vmatprep.subr.mxu0 0.0
        %383 = vmatpush1.msra.mxu0 0.0
        %384 = vmatprep.subr.mxu0 0.0
        %385 = vmatpush1.msra.mxu0 0.0
        %386 = vmatprep.subr.mxu0 0.0
        %387 = vmatpush1.msra.mxu0 0.0
        %388 = vmatprep.subr.mxu0 0.0
        %389 = vmatpush1.msra.mxu0 0.0
        %390 = vmatprep.subr.mxu0 0.0
        %391 = vmatpush1.msra.mxu0 0.0
        %392 = vmatprep.subr.mxu0 0.0
        %393 = vmatpush1.msra.mxu0 0.0
        %394 = vmatprep.subr.mxu0 0.0
        %395 = vmatpush1.msra.mxu0 0.0
        %396 = vmatprep.subr.mxu0 0.0
        %397 = vmatpush1.msra.mxu0 0.0
        %398 = vmatprep.subr.mxu0 0.0
        %399 = vmatpush1.msra.mxu0 0.0
        %400 = vmatprep.subr.mxu0 0.0
        %401 = vmatpush1.msra.mxu0 0.0
        %402 = vmatprep.subr.mxu0 0.0
        %403 = vmatpush1.msra.mxu0 0.0
        %404 = vmatprep.subr.mxu0 0.0
        %405 = vmatpush1.msra.mxu0 0.0
        %406 = vmatprep.subr.mxu0 0.0
        %407 = vmatpush1.msra.mxu0 0.0
        %408 = vmatprep.subr.mxu0 0.0
        %409 = vmatpush1.msra.mxu0 0.0
        %410 = vmatprep.subr.mxu0 0.0
        %411 = vmatpush1.msra.mxu0 0.0
        %412 = vmatprep.subr.mxu0 0.0
        %413 = vmatpush1.msra.mxu0 0.0
        %414 = vmatprep.subr.mxu0 0.0
        %415 = vmatpush1.msra.mxu0 0.0
        %416 = vmatprep.subr.mxu0 0.0
        %417 = vmatpush1.msra.mxu0 0.0
        %418 = vmatprep.subr.mxu0 0.0
        %419 = vmatpush1.msra.mxu0 0.0
        %420 = vmatprep.mubr.f32.mxu0 0.0
        %421 = vmatmul.mubr.f32.gmra.mrb[0].mxu0 %v354
        %v422 = vpop.f32.mrb[0].mxu0
        %v423 = vadd.f32 %v350, %v422
        %v424 = vpop.f32.mrb[0].mxu0
        %425 = vdwg.mxu0
        %v426 = vmax.f32 %v423, 0.0
        %v427 = vld [vmem:[%s3] sm:$0x3]
        %v428 = vld [vmem:[%s4] sm:$0x1]
        %v430 = vlaneseq
        %v431 = vshrl.u32 %v430, 7
        %v432 = vsub.s32 0, %v431
        %v433 = vrot.slane %v428, %v432
        %vm435 = vcmask 15360
        %v437 = vsel %vm435, %v426, 0
        %vm439 = vcmask 1041408
        %v441 = vsel %vm439, %v427, 0
        %443 = vmatprep.subr.mxu0 0.0
        %444 = vmatpush1.msra.mxu0 %v441
        %445 = vmatprep.subr.mxu0 0.0
        %446 = vmatpush1.msra.mxu0 0.0
        %447 = vmatprep.subr.mxu0 0.0
        %448 = vmatpush1.msra.mxu0 0.0
        %449 = vmatprep.subr.mxu0 0.0
        %450 = vmatpush1.msra.mxu0 0.0
        %451 = vmatprep.subr.mxu0 0.0
        %452 = vmatpush1.msra.mxu0 0.0
        %453 = vmatprep.subr.mxu0 0.0
        %454 = vmatpush1.msra.mxu0 0.0
        %455 = vmatprep.subr.mxu0 0.0
        %456 = vmatpush1.msra.mxu0 0.0
        %457 = vmatprep.subr.mxu0 0.0
        %458 = vmatpush1.msra.mxu0 0.0
        %459 = vmatprep.subr.mxu0 0.0
        %460 = vmatpush1.msra.mxu0 0.0
        %461 = vmatprep.subr.mxu0 0.0
        %462 = vmatpush1.msra.mxu0 0.0
        %463 = vmatprep.subr.mxu0 0.0
        %464 = vmatpush1.msra.mxu0 0.0
        %465 = vmatprep.subr.mxu0 0.0
        %466 = vmatpush1.msra.mxu0 0.0
        %467 = vmatprep.subr.mxu0 0.0
        %468 = vmatpush1.msra.mxu0 0.0
        %469 = vmatprep.subr.mxu0 0.0
        %470 = vmatpush1.msra.mxu0 0.0
        %471 = vmatprep.subr.mxu0 0.0
        %472 = vmatpush1.msra.mxu0 0.0
        %473 = vmatprep.subr.mxu0 0.0
        %474 = vmatpush1.msra.mxu0 0.0
        %475 = vmatprep.subr.mxu0 0.0
        %476 = vmatpush1.msra.mxu0 0.0
        %477 = vmatprep.subr.mxu0 0.0
        %478 = vmatpush1.msra.mxu0 0.0
        %479 = vmatprep.subr.mxu0 0.0
        %480 = vmatpush1.msra.mxu0 0.0
        %481 = vmatprep.subr.mxu0 0.0
        %482 = vmatpush1.msra.mxu0 0.0
        %483 = vmatprep.subr.mxu0 0.0
        %484 = vmatpush1.msra.mxu0 0.0
        %485 = vmatprep.subr.mxu0 0.0
        %486 = vmatpush1.msra.mxu0 0.0
        %487 = vmatprep.subr.mxu0 0.0
        %488 = vmatpush1.msra.mxu0 0.0
        %489 = vmatprep.subr.mxu0 0.0
        %490 = vmatpush1.msra.mxu0 0.0
        %491 = vmatprep.subr.mxu0 0.0
        %492 = vmatpush1.msra.mxu0 0.0
        %493 = vmatprep.subr.mxu0 0.0
        %494 = vmatpush1.msra.mxu0 0.0
        %495 = vmatprep.subr.mxu0 0.0
        %496 = vmatpush1.msra.mxu0 0.0
        %497 = vmatprep.subr.mxu0 0.0
        %498 = vmatpush1.msra.mxu0 0.0
        %499 = vmatprep.subr.mxu0 0.0
        %500 = vmatpush1.msra.mxu0 0.0
        %501 = vmatprep.subr.mxu0 0.0
        %502 = vmatpush1.msra.mxu0 0.0
        %503 = vmatprep.subr.mxu0 0.0
        %504 = vmatpush1.msra.mxu0 0.0
        %505 = vmatprep.subr.mxu0 0.0
        %506 = vmatpush1.msra.mxu0 0.0
        %507 = vmatprep.mubr.f32.mxu0 0.0
        %508 = vmatmul.mubr.f32.gmra.mrb[0].mxu0 %v437
        %v509 = vpop.f32.mrb[0].mxu0
        %v510 = vadd.f32 %v433, %v509
        %v511 = vpop.f32.mrb[0].mxu0
        %512 = vdwg.mxu0
        %v514 = vrot.slane %v510, 1
        %v516 = vadd.f32 %v510, %v514
        %v517 = vxor.u32 %v516, 2147483648
        %v518 = vmul.f32 %v517, 1.442695
        %v519 = vpow.pop %v518
        %v520 = vadd.f32 %v519, 1.0
        %v521 = vrcp.pop %v520
        %v522 = vmul.f32 1.0, %v521
        %v523 = vlaneseq
        %v524 = vshrl.u32 %v523, 7
        %v525 = vsub.s32 0, %v524
        %v526 = vrot.slane %v522, %v525
        %528 = vbcast.lane.b32.xlu0 %v526, 256
        %v529 = vpop.permute.xlu0 %528
        %s531 = sor.u32 256, 8
        %532 = vbcast.lane.b32.xlu0 %v526, %s531
        %v533 = vpop.permute.xlu0 %532
        %s535 = sor.u32 256, 16
        %536 = vbcast.lane.b32.xlu0 %v526, %s535
        %v537 = vpop.permute.xlu0 %536
        %s539 = sor.u32 256, 24
        %540 = vbcast.lane.b32.xlu0 %v526, %s539
        %v541 = vpop.permute.xlu0 %540
        %v542 = vmul.f32 %v243, %v529
        %v543 = vmul.f32 %v244, %v529
        %v544 = vmul.f32 %v245, %v533
        %v545 = vmul.f32 %v246, %v533
        %v546 = vmul.f32 %v247, %v537
        %v547 = vmul.f32 %v248, %v537
        %v548 = vmul.f32 %v249, %v541
        %v549 = vmul.f32 %v250, %v541
        %550 = vst [vmem:[%s242] sm:$0xff] %v542
        %551 = vst [vmem:[%s242 + $0x8] sm:$0xff] %v543
        %552 = vst [vmem:[%s242 + $0x10] sm:$0xff] %v544
        %553 = vst [vmem:[%s242 + $0x18] sm:$0xff] %v545
        %554 = vst [vmem:[%s242 + $0x20] sm:$0xff] %v546
        %555 = vst [vmem:[%s242 + $0x28] sm:$0xff] %v547
        %556 = vst [vmem:[%s242 + $0x30] sm:$0xff] %v548
        %557 = vst [vmem:[%s242 + $0x38] sm:$0xff] %v549
        %s558 = sand.u32 %s140, 1
        %s559 = scalar_lea.sflag [#allocation4], %s558
        %s560 = sand.u32 %s140, 1
        %s561 = smul.addr %s560, 64
        %s562 = scalar_lea.vmem [#allocation5], %s561
        // Predicated region
        $region45: #{tpu_custom_call.1} parent=39 // pred_check
          %p563 = pneg %p150
        $region46: #{tpu_custom_call.1} parent=39 // pred_check_branch
          %565 = sbr.rel (%p563) target = $region48
        $region47: #{tpu_custom_call.1} parent=39 // pred_region
          %s567 = ssub.s32 1024, 1024
          %568 = vsyncadd %s559, %s567
          %s569 = smul.addr %s22, 8
          %s570 = smul.addr %s569, 128
          %s571 = scalar_lea.hbm %s5, %s570
          %s572 = sshll.u32 %s562, 4
          %s573 = int_to_ptr.vmem [resolvable:$true] %s572
          %578 = dma.vmem_to_hbm [thread:$0]  %s573, 1024, %s571, %s559, 256, 256, 16
        $region48: #{tpu_custom_call.1} parent=39 // pred_fallthru
          _
      $region40: #{tpu_custom_call.1} parent=5 // pred_fallthru
        _
      %p579 = scmp.le.s32.totalorder 2, %s17
      // Predicated region
      $region49: #{tpu_custom_call.1} parent=5 // pred_check
        %p580 = pneg %p579
      $region50: #{tpu_custom_call.1} parent=5 // pred_check_branch
        %582 = sbr.rel (%p580) target = $region52
      $region51: #{tpu_custom_call.1} parent=5 // pred_region
        %s583 = ssub.s32 %s17, 2
        // Predicated region
        $region53: #{tpu_custom_call.1} parent=51 // pred_check
          %p584 = pneg %p156
        $region54: #{tpu_custom_call.1} parent=51 // pred_check_branch
          %586 = sbr.rel (%p584) target = $region56
        $region55: #{tpu_custom_call.1} parent=51 // pred_region
          %s587 = sand.u32 %s141, 1
          %s588 = scalar_lea.sflag [#allocation4], %s587
          %s589 = sand.u32 %s141, 1
          %s590 = smul.addr %s589, 64
          %s591 = scalar_lea.vmem [#allocation5], %s590
          %592 = dma.done %s588, 1024
        $region56: #{tpu_custom_call.1} parent=51 // pred_fallthru
          _
      $region52: #{tpu_custom_call.1} parent=5 // pred_fallthru
        _
    $region6: #{tpu_custom_call.1} parent=1 // loop_footer
      %s21 = sadd.s32 1, %s17
    $region7: #{tpu_custom_call.1} parent=1 // loop_footer_branch
      %16 = sbr.rel target = $region3
    $region8: #{tpu_custom_call.1} parent=1 // loop_exit
      _
    %593 = vsyncpa [#allocation3], 1
    %s594 = scalar_lea.sflag [#allocation3], 1
    %595 = vsyncpa %s594, 1
    %596 = vsyncpa [#allocation4], 1
    %s597 = scalar_lea.sflag [#allocation4], 1
    %598 = vsyncpa %s597, 1

</llo_original>
